<compile_context>
chip_gen: v6e
topology: v6e:2x2x1
jax: 0.10.0
libtpu: 0.0.40
codegen_flags: <defaults>
</compile_context>

<pallas_src>
import jax
import jax.numpy as jnp
from jax.experimental import pallas as pl
from jax.experimental.pallas import tpu as pltpu


def _conv1x1_kernel(w_ref, x_ref, o_ref):
    # w_ref: (Cout, Cin), x_ref: (Cin, HW), o_ref: (Cout, HW)
    o_ref[...] = jnp.dot(
        w_ref[...], x_ref[...], preferred_element_type=jnp.float32
    ).astype(o_ref.dtype)


def _conv1x1_kernel_batched(w_ref, x_ref, o_ref):
    # w_ref: (Cout, Cin), x_ref: (1, Cin, HW), o_ref: (1, Cout, HW)
    o_ref[0] = jnp.dot(
        w_ref[...], x_ref[0], preferred_element_type=jnp.float32
    ).astype(o_ref.dtype)


def conv2d_1x1(x_nchw: jax.Array, weight: jax.Array) -> jax.Array:
    """1x1 conv, stride 1, no bias.

    x_nchw: (N, Cin, H, W) float32
    weight: (Cout, Cin, 1, 1) float32  (PyTorch Conv2d weight layout)
    returns: (N, Cout, H, W) float32
    """
    N, Cin, H, W = x_nchw.shape
    Cout = weight.shape[0]
    HW = H * W

    # Pure reshapes -- no data movement, no transposes.
    w_oc = weight.reshape(Cout, Cin)          # (Cout, Cin), used directly as LHS
    x_nck = x_nchw.reshape(N, Cin, HW)        # NCHW contiguous -> (N, Cin, HW)

    if N == 1:
        # Single-step case: no grid, whole arrays resident in VMEM.
        out = pl.pallas_call(
            _conv1x1_kernel,
            out_shape=jax.ShapeDtypeStruct((Cout, HW), x_nchw.dtype),
        )(w_oc, x_nck.reshape(Cin, HW))
        return out.reshape(N, Cout, H, W)

    # General batch: grid over N; weight block is resident across the grid.
    out = pl.pallas_call(
        _conv1x1_kernel_batched,
        out_shape=jax.ShapeDtypeStruct((N, Cout, HW), x_nchw.dtype),
        grid=(N,),
        in_specs=[
            pl.BlockSpec((Cout, Cin), lambda n: (0, 0)),
            pl.BlockSpec((1, Cin, HW), lambda n: (n, 0, 0)),
        ],
        out_specs=pl.BlockSpec((1, Cout, HW), lambda n: (n, 0, 0)),
        compiler_params=pltpu.CompilerParams(
            dimension_semantics=("parallel",)
        ),
    )(w_oc, x_nck)
    return out.reshape(N, Cout, H, W)


if __name__ == "__main__":
    key = jax.random.PRNGKey(0)
    kx, kw = jax.random.split(key)

    # Shapes implied by the module: Conv2d(244 -> 244), input (1, 244, 14, 14).
    N, Cin, H, W = 1, 244, 14, 14
    Cout = 244

    x = jax.random.normal(kx, (N, Cin, H, W), dtype=jnp.float32)
    # Deterministic synthetic weight (PyTorch Conv2d weight shape: Cout, Cin, 1, 1).
    weight = (
        jax.random.normal(kw, (Cout, Cin, 1, 1), dtype=jnp.float32)
        * (1.0 / jnp.sqrt(Cin))
    )

    out = conv2d_1x1(x, weight)
    out = jax.block_until_ready(out)

    # Reference: plain-JAX einsum over channels.
    ref = jnp.einsum("nchw,oc->nohw", x, weight.reshape(Cout, Cin))
    assert out.shape == (N, Cout, H, W)
    assert jnp.allclose(out, ref, atol=1e-4, rtol=1e-4)

    # Also exercise the batched (N > 1) grid path for correctness.
    xb = jax.random.normal(kx, (2, Cin, H, W), dtype=jnp.float32)
    outb = jax.block_until_ready(conv2d_1x1(xb, weight))
    refb = jnp.einsum("nchw,oc->nohw", xb, weight.reshape(Cout, Cin))
    assert outb.shape == (2, Cout, H, W)
    assert jnp.allclose(outb, refb, atol=1e-4, rtol=1e-4)

    print("KERNEL_OK")
</pallas_src>

<mosaic_0001>
module attributes {stable_mosaic.version = 11 : i64} {
  func.func @_conv1x1_kernel(%arg0: memref<244x244xf32, #tpu.memory_space<vmem>>, %arg1: memref<244x196xf32, #tpu.memory_space<vmem>>, %arg2: memref<244x196xf32, #tpu.memory_space<vmem>>) attributes {dimension_semantics = [], scalar_prefetch = 0 : i64, scratch_operands = 0 : i64, tpu.core_type = #tpu.core_type<tc>} {
    %c0 = arith.constant 0 : index
    %c0_0 = arith.constant 0 : index
    %0 = vector.load %arg0[%c0, %c0_0] : memref<244x244xf32, #tpu.memory_space<vmem>>, vector<244x244xf32>
    %c0_1 = arith.constant 0 : index
    %c0_2 = arith.constant 0 : index
    %1 = vector.load %arg1[%c0_1, %c0_2] : memref<244x196xf32, #tpu.memory_space<vmem>>, vector<244x196xf32>
    %cst = arith.constant dense<0.000000e+00> : vector<244x196xf32>
    %2 = tpu.matmul %0, %1, %cst {dimension_numbers = #tpu.dot_dimension_numbers<[1], [0], [0], [1], [0, 0, 1, 1], [], []>} : vector<244x244xf32>, vector<244x196xf32>, vector<244x196xf32> -> vector<244x196xf32>
    %c0_3 = arith.constant 0 : index
    %c0_4 = arith.constant 0 : index
    %3 = vector.load %arg2[%c0_3, %c0_4] : memref<244x196xf32, #tpu.memory_space<vmem>>, vector<244x196xf32>
    tpu.vector_store %arg2[%c0_3, %c0_4], %2 {strides = array<i32>} : memref<244x196xf32, #tpu.memory_space<vmem>>, vector<244x196xf32>,
    return
  }
}

</mosaic_0001>

<llo_original>
// kernel: tpu_custom_call.1
$region0: #{tpu_custom_call.1}
  #allocation0 [shape = 'u32[]', space=smem, size = 0x4, offset = 0x4, fixed_abs, tag = 'smem constant byte address 0x4 - core index']
  #allocation1 [shape = 'u32[144,128]{1,0:T(1,128)}', space=vmem, size = 0x12000, scoped, tag = 'internal scratch']
  %s0 = inlined_call_operand.vmem [shape: f32[244,244], index: 0, kind: input, shape index: {}]
  %s1 = inlined_call_operand.vmem [shape: f32[244,196], index: 1, kind: input, shape index: {}]
  %s2 = inlined_call_operand.vmem [shape: f32[244,196], index: 2, kind: output, shape index: {}]
  %s3 = sld [smem:[#allocation0]]
  $region18: #{tpu_custom_call.1} parent=0
    _
  %s5 = ssub.s32 1, %s3
  %s6 = scalar_select 0, %s5, %s3
  // Predicated region
  $region2: #{tpu_custom_call.1} parent=0 // pred_check
    _
  $region3: #{tpu_custom_call.1} parent=0 // pred_check_branch
    %8 = sbr.rel (0) target = $region5
  $region4: #{tpu_custom_call.1} parent=0 // pred_region
    _
  $region5: #{tpu_custom_call.1} parent=0 // pred_fallthru
    _
  // Predicated region
  $region6: #{tpu_custom_call.1} parent=0 // pred_check
    _
  $region7: #{tpu_custom_call.1} parent=0 // pred_check_branch
    %10 = sbr.rel (0) target = $region9
  $region8: #{tpu_custom_call.1} parent=0 // pred_region
    _
  $region9: #{tpu_custom_call.1} parent=0 // pred_fallthru
    _
  %v11 = vld [vmem:[%s0] sm:$0xff]
  %v12 = vld [vmem:[%s0 + $0x8] sm:$0xff]
  %v13 = vld [vmem:[%s0 + $0x10] sm:$0xff]
  %v14 = vld [vmem:[%s0 + $0x18] sm:$0xff]
  %v15 = vld [vmem:[%s0 + $0x20] sm:$0xff]
  %v16 = vld [vmem:[%s0 + $0x28] sm:$0xff]
  %v17 = vld [vmem:[%s0 + $0x30] sm:$0xff]
  %v18 = vld [vmem:[%s0 + $0x38] sm:$0xff]
  %v19 = vld [vmem:[%s0 + $0x40] sm:$0xff]
  %v20 = vld [vmem:[%s0 + $0x48] sm:$0xff]
  %v21 = vld [vmem:[%s0 + $0x50] sm:$0xff]
  %v22 = vld [vmem:[%s0 + $0x58] sm:$0xff]
  %v23 = vld [vmem:[%s0 + $0x60] sm:$0xff]
  %v24 = vld [vmem:[%s0 + $0x68] sm:$0xff]
  %v25 = vld [vmem:[%s0 + $0x70] sm:$0xff]
  %v26 = vld [vmem:[%s0 + $0x78] sm:$0xff]
  %v27 = vld [vmem:[%s0 + $0x80] sm:$0xff]
  %v28 = vld [vmem:[%s0 + $0x88] sm:$0xff]
  %v29 = vld [vmem:[%s0 + $0x90] sm:$0xff]
  %v30 = vld [vmem:[%s0 + $0x98] sm:$0xff]
  %v31 = vld [vmem:[%s0 + $0xa0] sm:$0xff]
  %v32 = vld [vmem:[%s0 + $0xa8] sm:$0xff]
  %v33 = vld [vmem:[%s0 + $0xb0] sm:$0xff]
  %v34 = vld [vmem:[%s0 + $0xb8] sm:$0xff]
  %v35 = vld [vmem:[%s0 + $0xc0] sm:$0xff]
  %v36 = vld [vmem:[%s0 + $0xc8] sm:$0xff]
  %v37 = vld [vmem:[%s0 + $0xd0] sm:$0xff]
  %v38 = vld [vmem:[%s0 + $0xd8] sm:$0xff]
  %v39 = vld [vmem:[%s0 + $0xe0] sm:$0xff]
  %v40 = vld [vmem:[%s0 + $0xe8] sm:$0xff]
  %v41 = vld [vmem:[%s0 + $0xf0] sm:$0xff]
  %v42 = vld [vmem:[%s0 + $0xf8] sm:$0xff]
  %v43 = vld [vmem:[%s0 + $0x100] sm:$0xff]
  %v44 = vld [vmem:[%s0 + $0x108] sm:$0xff]
  %v45 = vld [vmem:[%s0 + $0x110] sm:$0xff]
  %v46 = vld [vmem:[%s0 + $0x118] sm:$0xff]
  %v47 = vld [vmem:[%s0 + $0x120] sm:$0xff]
  %v48 = vld [vmem:[%s0 + $0x128] sm:$0xff]
  %v49 = vld [vmem:[%s0 + $0x130] sm:$0xff]
  %v50 = vld [vmem:[%s0 + $0x138] sm:$0xff]
  %v51 = vld [vmem:[%s0 + $0x140] sm:$0xff]
  %v52 = vld [vmem:[%s0 + $0x148] sm:$0xff]
  %v53 = vld [vmem:[%s0 + $0x150] sm:$0xff]
  %v54 = vld [vmem:[%s0 + $0x158] sm:$0xff]
  %v55 = vld [vmem:[%s0 + $0x160] sm:$0xff]
  %v56 = vld [vmem:[%s0 + $0x168] sm:$0xff]
  %v57 = vld [vmem:[%s0 + $0x170] sm:$0xff]
  %v58 = vld [vmem:[%s0 + $0x178] sm:$0xff]
  %v59 = vld [vmem:[%s0 + $0x180] sm:$0xff]
  %v60 = vld [vmem:[%s0 + $0x188] sm:$0xff]
  %v61 = vld [vmem:[%s0 + $0x190] sm:$0xff]
  %v62 = vld [vmem:[%s0 + $0x198] sm:$0xff]
  %v63 = vld [vmem:[%s0 + $0x1a0] sm:$0xff]
  %v64 = vld [vmem:[%s0 + $0x1a8] sm:$0xff]
  %v65 = vld [vmem:[%s0 + $0x1b0] sm:$0xff]
  %v66 = vld [vmem:[%s0 + $0x1b8] sm:$0xff]
  %v67 = vld [vmem:[%s0 + $0x1c0] sm:$0xff]
  %v68 = vld [vmem:[%s0 + $0x1c8] sm:$0xff]
  %v69 = vld [vmem:[%s0 + $0x1d0] sm:$0xff]
  %v70 = vld [vmem:[%s0 + $0x1d8] sm:$0xff]
  %v71 = vld [vmem:[%s0 + $0x1e0] sm:$0xf]
  %v72 = vld [vmem:[%s0 + $0x1e8] sm:$0xf]
  %v73 = vld [vmem:[%s1] sm:$0xff]
  %v74 = vld [vmem:[%s1 + $0x8] sm:$0xff]
  %v75 = vld [vmem:[%s1 + $0x10] sm:$0xff]
  %v76 = vld [vmem:[%s1 + $0x18] sm:$0xff]
  %v77 = vld [vmem:[%s1 + $0x20] sm:$0xff]
  %v78 = vld [vmem:[%s1 + $0x28] sm:$0xff]
  %v79 = vld [vmem:[%s1 + $0x30] sm:$0xff]
  %v80 = vld [vmem:[%s1 + $0x38] sm:$0xff]
  %v81 = vld [vmem:[%s1 + $0x40] sm:$0xff]
  %v82 = vld [vmem:[%s1 + $0x48] sm:$0xff]
  %v83 = vld [vmem:[%s1 + $0x50] sm:$0xff]
  %v84 = vld [vmem:[%s1 + $0x58] sm:$0xff]
  %v85 = vld [vmem:[%s1 + $0x60] sm:$0xff]
  %v86 = vld [vmem:[%s1 + $0x68] sm:$0xff]
  %v87 = vld [vmem:[%s1 + $0x70] sm:$0xff]
  %v88 = vld [vmem:[%s1 + $0x78] sm:$0xff]
  %v89 = vld [vmem:[%s1 + $0x80] sm:$0xff]
  %v90 = vld [vmem:[%s1 + $0x88] sm:$0xff]
  %v91 = vld [vmem:[%s1 + $0x90] sm:$0xff]
  %v92 = vld [vmem:[%s1 + $0x98] sm:$0xff]
  %v93 = vld [vmem:[%s1 + $0xa0] sm:$0xff]
  %v94 = vld [vmem:[%s1 + $0xa8] sm:$0xff]
  %v95 = vld [vmem:[%s1 + $0xb0] sm:$0xff]
  %v96 = vld [vmem:[%s1 + $0xb8] sm:$0xff]
  %v97 = vld [vmem:[%s1 + $0xc0] sm:$0xff]
  %v98 = vld [vmem:[%s1 + $0xc8] sm:$0xff]
  %v99 = vld [vmem:[%s1 + $0xd0] sm:$0xff]
  %v100 = vld [vmem:[%s1 + $0xd8] sm:$0xff]
  %v101 = vld [vmem:[%s1 + $0xe0] sm:$0xff]
  %v102 = vld [vmem:[%s1 + $0xe8] sm:$0xff]
  %v103 = vld [vmem:[%s1 + $0xf0] sm:$0xff]
  %v104 = vld [vmem:[%s1 + $0xf8] sm:$0xff]
  %v105 = vld [vmem:[%s1 + $0x100] sm:$0xff]
  %v106 = vld [vmem:[%s1 + $0x108] sm:$0xff]
  %v107 = vld [vmem:[%s1 + $0x110] sm:$0xff]
  %v108 = vld [vmem:[%s1 + $0x118] sm:$0xff]
  %v109 = vld [vmem:[%s1 + $0x120] sm:$0xff]
  %v110 = vld [vmem:[%s1 + $0x128] sm:$0xff]
  %v111 = vld [vmem:[%s1 + $0x130] sm:$0xff]
  %v112 = vld [vmem:[%s1 + $0x138] sm:$0xff]
  %v113 = vld [vmem:[%s1 + $0x140] sm:$0xff]
  %v114 = vld [vmem:[%s1 + $0x148] sm:$0xff]
  %v115 = vld [vmem:[%s1 + $0x150] sm:$0xff]
  %v116 = vld [vmem:[%s1 + $0x158] sm:$0xff]
  %v117 = vld [vmem:[%s1 + $0x160] sm:$0xff]
  %v118 = vld [vmem:[%s1 + $0x168] sm:$0xff]
  %v119 = vld [vmem:[%s1 + $0x170] sm:$0xff]
  %v120 = vld [vmem:[%s1 + $0x178] sm:$0xff]
  %v121 = vld [vmem:[%s1 + $0x180] sm:$0xff]
  %v122 = vld [vmem:[%s1 + $0x188] sm:$0xff]
  %v123 = vld [vmem:[%s1 + $0x190] sm:$0xff]
  %v124 = vld [vmem:[%s1 + $0x198] sm:$0xff]
  %v125 = vld [vmem:[%s1 + $0x1a0] sm:$0xff]
  %v126 = vld [vmem:[%s1 + $0x1a8] sm:$0xff]
  %v127 = vld [vmem:[%s1 + $0x1b0] sm:$0xff]
  %v128 = vld [vmem:[%s1 + $0x1b8] sm:$0xff]
  %v129 = vld [vmem:[%s1 + $0x1c0] sm:$0xff]
  %v130 = vld [vmem:[%s1 + $0x1c8] sm:$0xff]
  %v131 = vld [vmem:[%s1 + $0x1d0] sm:$0xff]
  %v132 = vld [vmem:[%s1 + $0x1d8] sm:$0xff]
  %v133 = vld [vmem:[%s1 + $0x1e0] sm:$0xf]
  %v134 = vld [vmem:[%s1 + $0x1e8] sm:$0xf]
  %vm135 = vcmask 949248
  %v137 = vsel %vm135, %v12, 0
  %v140 = vsel %vm135, %v14, 0
  %v143 = vsel %vm135, %v16, 0
  %v146 = vsel %vm135, %v18, 0
  %v149 = vsel %vm135, %v20, 0
  %v152 = vsel %vm135, %v22, 0
  %v155 = vsel %vm135, %v24, 0
  %v158 = vsel %vm135, %v26, 0
  %v161 = vsel %vm135, %v28, 0
  %v164 = vsel %vm135, %v30, 0
  %v167 = vsel %vm135, %v32, 0
  %v170 = vsel %vm135, %v34, 0
  %v173 = vsel %vm135, %v36, 0
  %v176 = vsel %vm135, %v38, 0
  %v179 = vsel %vm135, %v40, 0
  %v182 = vsel %vm135, %v42, 0
  %v185 = vsel %vm135, %v44, 0
  %v188 = vsel %vm135, %v46, 0
  %v191 = vsel %vm135, %v48, 0
  %v194 = vsel %vm135, %v50, 0
  %v197 = vsel %vm135, %v52, 0
  %v200 = vsel %vm135, %v54, 0
  %v203 = vsel %vm135, %v56, 0
  %v206 = vsel %vm135, %v58, 0
  %v209 = vsel %vm135, %v60, 0
  %v212 = vsel %vm135, %v62, 0
  %v215 = vsel %vm135, %v64, 0
  %v218 = vsel %vm135, %v66, 0
  %v221 = vsel %vm135, %v68, 0
  %v224 = vsel %vm135, %v70, 0
  %v227 = vsel %vm135, %v72, 0
  %vm229 = vcmask 1043456
  %v231 = vsel %vm229, %v133, 0
  %v234 = vsel %vm229, %v134, 0
  %236 = vmatprep.subr.mxu0 %v104
  %237 = vmatpush1.msra.mxu0 %v103
  %238 = vmatprep.subr.mxu0 %v102
  %239 = vmatpush1.msra.mxu0 %v101
  %240 = vmatprep.subr.mxu0 %v100
  %241 = vmatpush1.msra.mxu0 %v99
  %242 = vmatprep.subr.mxu0 %v98
  %243 = vmatpush1.msra.mxu0 %v97
  %244 = vmatprep.subr.mxu0 %v96
  %245 = vmatpush1.msra.mxu0 %v95
  %246 = vmatprep.subr.mxu0 %v94
  %247 = vmatpush1.msra.mxu0 %v93
  %248 = vmatprep.subr.mxu0 %v92
  %249 = vmatpush1.msra.mxu0 %v91
  %250 = vmatprep.subr.mxu0 %v90
  %251 = vmatpush1.msra.mxu0 %v89
  %252 = vmatprep.subr.mxu0 %v88
  %253 = vmatpush1.msra.mxu0 %v87
  %254 = vmatprep.subr.mxu0 %v86
  %255 = vmatpush1.msra.mxu0 %v85
  %256 = vmatprep.subr.mxu0 %v84
  %257 = vmatpush1.msra.mxu0 %v83
  %258 = vmatprep.subr.mxu0 %v82
  %259 = vmatpush1.msra.mxu0 %v81
  %260 = vmatprep.subr.mxu0 %v80
  %261 = vmatpush1.msra.mxu0 %v79
  %262 = vmatprep.subr.mxu0 %v78
  %263 = vmatpush1.msra.mxu0 %v77
  %264 = vmatprep.subr.mxu0 %v76
  %265 = vmatpush1.msra.mxu0 %v75
  %266 = vmatprep.subr.mxu0 %v74
  %267 = vmatpush1.msra.mxu0 %v73
  %268 = vmatprep.subr.mxu0 0.0
  %269 = vmatpush2.msra.mxu0 0.0
  %270 = vmatprep.subr.mxu0 %v234
  %271 = vmatpush2.msra.mxu0 %v231
  %272 = vmatprep.subr.mxu0 %v132
  %273 = vmatpush2.msra.mxu0 %v131
  %274 = vmatprep.subr.mxu0 %v130
  %275 = vmatpush2.msra.mxu0 %v129
  %276 = vmatprep.subr.mxu0 %v128
  %277 = vmatpush2.msra.mxu0 %v127
  %278 = vmatprep.subr.mxu0 %v126
  %279 = vmatpush2.msra.mxu0 %v125
  %280 = vmatprep.subr.mxu0 %v124
  %281 = vmatpush2.msra.mxu0 %v123
  %282 = vmatprep.subr.mxu0 %v122
  %283 = vmatpush2.msra.mxu0 %v121
  %284 = vmatprep.subr.mxu0 %v120
  %285 = vmatpush2.msra.mxu0 %v119
  %286 = vmatprep.subr.mxu0 %v118
  %287 = vmatpush2.msra.mxu0 %v117
  %288 = vmatprep.subr.mxu0 %v116
  %289 = vmatpush2.msra.mxu0 %v115
  %290 = vmatprep.subr.mxu0 %v114
  %291 = vmatpush2.msra.mxu0 %v113
  %292 = vmatprep.subr.mxu0 %v112
  %293 = vmatpush2.msra.mxu0 %v111
  %294 = vmatprep.subr.mxu0 %v110
  %295 = vmatpush2.msra.mxu0 %v109
  %296 = vmatprep.subr.mxu0 %v108
  %297 = vmatpush2.msra.mxu0 %v107
  %298 = vmatprep.subr.mxu0 %v106
  %299 = vmatpush2.msra.mxu0 %v105
  %300 = vmatprep.mubr.f32.mxu0 %v137
  %301 = vmatmul.mubr.f32.gmra.mxu0 %v11
  %v302 = vpop.f32.mrf.mxu0
  %v303 = vadd.f32 0.0, %v302
  %v304 = vpop.f32.mrf.mxu0
  %v305 = vadd.f32 0.0, %v304
  %306 = vmatprep.mubr.f32.mxu0 %v140
  %307 = vmatmul.mubr.f32.gmra.mxu0 %v13
  %v308 = vpop.f32.mrf.mxu0
  %v309 = vadd.f32 0.0, %v308
  %v310 = vpop.f32.mrf.mxu0
  %v311 = vadd.f32 0.0, %v310
  %312 = vmatprep.mubr.f32.mxu0 %v143
  %313 = vmatmul.mubr.f32.gmra.mxu0 %v15
  %v314 = vpop.f32.mrf.mxu0
  %v315 = vadd.f32 0.0, %v314
  %v316 = vpop.f32.mrf.mxu0
  %v317 = vadd.f32 0.0, %v316
  %318 = vmatprep.mubr.f32.mxu0 %v146
  %319 = vmatmul.mubr.f32.gmra.mxu0 %v17
  %v320 = vpop.f32.mrf.mxu0
  %v321 = vadd.f32 0.0, %v320
  %v322 = vpop.f32.mrf.mxu0
  %v323 = vadd.f32 0.0, %v322
  %324 = vmatprep.mubr.f32.mxu0 %v149
  %325 = vmatmul.mubr.f32.gmra.mxu0 %v19
  %v326 = vpop.f32.mrf.mxu0
  %v327 = vadd.f32 0.0, %v326
  %v328 = vpop.f32.mrf.mxu0
  %v329 = vadd.f32 0.0, %v328
  %330 = vmatprep.mubr.f32.mxu0 %v152
  %331 = vmatmul.mubr.f32.gmra.mxu0 %v21
  %v332 = vpop.f32.mrf.mxu0
  %v333 = vadd.f32 0.0, %v332
  %v334 = vpop.f32.mrf.mxu0
  %v335 = vadd.f32 0.0, %v334
  %336 = vmatprep.mubr.f32.mxu0 %v155
  %337 = vmatmul.mubr.f32.gmra.mxu0 %v23
  %v338 = vpop.f32.mrf.mxu0
  %v339 = vadd.f32 0.0, %v338
  %v340 = vpop.f32.mrf.mxu0
  %v341 = vadd.f32 0.0, %v340
  %342 = vmatprep.mubr.f32.mxu0 %v158
  %343 = vmatmul.mubr.f32.gmra.mxu0 %v25
  %v344 = vpop.f32.mrf.mxu0
  %v345 = vadd.f32 0.0, %v344
  %v346 = vpop.f32.mrf.mxu0
  %v347 = vadd.f32 0.0, %v346
  %348 = vmatprep.mubr.f32.mxu0 %v161
  %349 = vmatmul.mubr.f32.gmra.mxu0 %v27
  %v350 = vpop.f32.mrf.mxu0
  %v351 = vadd.f32 0.0, %v350
  %v352 = vpop.f32.mrf.mxu0
  %v353 = vadd.f32 0.0, %v352
  %354 = vmatprep.mubr.f32.mxu0 %v164
  %355 = vmatmul.mubr.f32.gmra.mxu0 %v29
  %v356 = vpop.f32.mrf.mxu0
  %v357 = vadd.f32 0.0, %v356
  %v358 = vpop.f32.mrf.mxu0
  %v359 = vadd.f32 0.0, %v358
  %360 = vmatprep.mubr.f32.mxu0 %v167
  %361 = vmatmul.mubr.f32.gmra.mxu0 %v31
  %v362 = vpop.f32.mrf.mxu0
  %v363 = vadd.f32 0.0, %v362
  %v364 = vpop.f32.mrf.mxu0
  %v365 = vadd.f32 0.0, %v364
  %366 = vmatprep.mubr.f32.mxu0 %v170
  %367 = vmatmul.mubr.f32.gmra.mxu0 %v33
  %v368 = vpop.f32.mrf.mxu0
  %v369 = vadd.f32 0.0, %v368
  %v370 = vpop.f32.mrf.mxu0
  %v371 = vadd.f32 0.0, %v370
  %372 = vmatprep.mubr.f32.mxu0 %v173
  %373 = vmatmul.mubr.f32.gmra.mxu0 %v35
  %v374 = vpop.f32.mrf.mxu0
  %v375 = vadd.f32 0.0, %v374
  %v376 = vpop.f32.mrf.mxu0
  %v377 = vadd.f32 0.0, %v376
  %378 = vmatprep.mubr.f32.mxu0 %v176
  %379 = vmatmul.mubr.f32.gmra.mxu0 %v37
  %v380 = vpop.f32.mrf.mxu0
  %v381 = vadd.f32 0.0, %v380
  %v382 = vpop.f32.mrf.mxu0
  %v383 = vadd.f32 0.0, %v382
  %384 = vmatprep.mubr.f32.mxu0 %v179
  %385 = vmatmul.mubr.f32.gmra.mxu0 %v39
  %v386 = vpop.f32.mrf.mxu0
  %v387 = vadd.f32 0.0, %v386
  %v388 = vpop.f32.mrf.mxu0
  %v389 = vadd.f32 0.0, %v388
  %390 = vmatprep.mubr.f32.mxu0 %v182
  %391 = vmatmul.mubr.f32.gmra.mxu0 %v41
  %v392 = vpop.f32.mrf.mxu0
  %v393 = vadd.f32 0.0, %v392
  %v394 = vpop.f32.mrf.mxu0
  %v395 = vadd.f32 0.0, %v394
  %396 = vmatprep.mubr.f32.mxu0 %v185
  %397 = vmatmul.mubr.f32.gmra.mxu0 %v43
  %v398 = vpop.f32.mrf.mxu0
  %v399 = vadd.f32 0.0, %v398
  %v400 = vpop.f32.mrf.mxu0
  %v401 = vadd.f32 0.0, %v400
  %402 = vmatprep.mubr.f32.mxu0 %v188
  %403 = vmatmul.mubr.f32.gmra.mxu0 %v45
  %v404 = vpop.f32.mrf.mxu0
  %v405 = vadd.f32 0.0, %v404
  %v406 = vpop.f32.mrf.mxu0
  %v407 = vadd.f32 0.0, %v406
  %408 = vmatprep.mubr.f32.mxu0 %v191
  %409 = vmatmul.mubr.f32.gmra.mxu0 %v47
  %v410 = vpop.f32.mrf.mxu0
  %v411 = vadd.f32 0.0, %v410
  %v412 = vpop.f32.mrf.mxu0
  %v413 = vadd.f32 0.0, %v412
  %414 = vmatprep.mubr.f32.mxu0 %v194
  %415 = vmatmul.mubr.f32.gmra.mxu0 %v49
  %v416 = vpop.f32.mrf.mxu0
  %v417 = vadd.f32 0.0, %v416
  %v418 = vpop.f32.mrf.mxu0
  %v419 = vadd.f32 0.0, %v418
  %420 = vmatprep.mubr.f32.mxu0 %v197
  %421 = vmatmul.mubr.f32.gmra.mxu0 %v51
  %v422 = vpop.f32.mrf.mxu0
  %v423 = vadd.f32 0.0, %v422
  %v424 = vpop.f32.mrf.mxu0
  %v425 = vadd.f32 0.0, %v424
  %426 = vmatprep.mubr.f32.mxu0 %v200
  %427 = vmatmul.mubr.f32.gmra.mxu0 %v53
  %v428 = vpop.f32.mrf.mxu0
  %v429 = vadd.f32 0.0, %v428
  %v430 = vpop.f32.mrf.mxu0
  %v431 = vadd.f32 0.0, %v430
  %432 = vmatprep.mubr.f32.mxu0 %v203
  %433 = vmatmul.mubr.f32.gmra.mxu0 %v55
  %v434 = vpop.f32.mrf.mxu0
  %v435 = vadd.f32 0.0, %v434
  %v436 = vpop.f32.mrf.mxu0
  %v437 = vadd.f32 0.0, %v436
  %438 = vmatprep.mubr.f32.mxu0 %v206
  %439 = vmatmul.mubr.f32.gmra.mxu0 %v57
  %v440 = vpop.f32.mrf.mxu0
  %v441 = vadd.f32 0.0, %v440
  %v442 = vpop.f32.mrf.mxu0
  %v443 = vadd.f32 0.0, %v442
  %444 = vmatprep.mubr.f32.mxu0 %v209
  %445 = vmatmul.mubr.f32.gmra.mxu0 %v59
  %v446 = vpop.f32.mrf.mxu0
  %v447 = vadd.f32 0.0, %v446
  %v448 = vpop.f32.mrf.mxu0
  %v449 = vadd.f32 0.0, %v448
  %450 = vmatprep.mubr.f32.mxu0 %v212
  %451 = vmatmul.mubr.f32.gmra.mxu0 %v61
  %v452 = vpop.f32.mrf.mxu0
  %v453 = vadd.f32 0.0, %v452
  %v454 = vpop.f32.mrf.mxu0
  %v455 = vadd.f32 0.0, %v454
  %456 = vmatprep.mubr.f32.mxu0 %v215
  %457 = vmatmul.mubr.f32.gmra.mxu0 %v63
  %v458 = vpop.f32.mrf.mxu0
  %v459 = vadd.f32 0.0, %v458
  %v460 = vpop.f32.mrf.mxu0
  %v461 = vadd.f32 0.0, %v460
  %462 = vmatprep.mubr.f32.mxu0 %v218
  %463 = vmatmul.mubr.f32.gmra.mxu0 %v65
  %v464 = vpop.f32.mrf.mxu0
  %v465 = vadd.f32 0.0, %v464
  %v466 = vpop.f32.mrf.mxu0
  %v467 = vadd.f32 0.0, %v466
  %468 = vmatprep.mubr.f32.mxu0 %v221
  %469 = vmatmul.mubr.f32.gmra.mxu0 %v67
  %v470 = vpop.f32.mrf.mxu0
  %v471 = vadd.f32 0.0, %v470
  %v472 = vpop.f32.mrf.mxu0
  %v473 = vadd.f32 0.0, %v472
  %474 = vmatprep.mubr.f32.mxu0 %v224
  %475 = vmatmul.mubr.f32.gmra.mxu0 %v69
  %v476 = vpop.f32.mrf.mxu0
  %v477 = vadd.f32 0.0, %v476
  %v478 = vpop.f32.mrf.mxu0
  %v479 = vadd.f32 0.0, %v478
  %480 = vmatprep.mubr.f32.mxu0 %v227
  %481 = vmatmul.mubr.f32.gmra.mxu0 %v71
  %v482 = vpop.f32.mrf.mxu0
  %v483 = vadd.f32 0.0, %v482
  %v484 = vpop.f32.mrf.mxu0
  %v485 = vadd.f32 0.0, %v484
  %486 = vdwg.mxu0
  %487 = vst [vmem:[%s2] sm:$0xff] %v303
  %vm488 = vcmask 556032
  %489 = vst.msk [vmem:[%s2 + $0x8] sm:$0xff] %vm488, %v305
  %490 = vst [vmem:[%s2 + $0x10] sm:$0xff] %v309
  %491 = vst.msk [vmem:[%s2 + $0x18] sm:$0xff] %vm488, %v311
  %492 = vst [vmem:[%s2 + $0x20] sm:$0xff] %v315
  %493 = vst.msk [vmem:[%s2 + $0x28] sm:$0xff] %vm488, %v317
  %494 = vst [vmem:[%s2 + $0x30] sm:$0xff] %v321
  %495 = vst.msk [vmem:[%s2 + $0x38] sm:$0xff] %vm488, %v323
  %496 = vst [vmem:[%s2 + $0x40] sm:$0xff] %v327
  %497 = vst.msk [vmem:[%s2 + $0x48] sm:$0xff] %vm488, %v329
  %498 = vst [vmem:[%s2 + $0x50] sm:$0xff] %v333
  %499 = vst.msk [vmem:[%s2 + $0x58] sm:$0xff] %vm488, %v335
  %500 = vst [vmem:[%s2 + $0x60] sm:$0xff] %v339
  %501 = vst.msk [vmem:[%s2 + $0x68] sm:$0xff] %vm488, %v341
  %502 = vst [vmem:[%s2 + $0x70] sm:$0xff] %v345
  %503 = vst.msk [vmem:[%s2 + $0x78] sm:$0xff] %vm488, %v347
  %504 = vst [vmem:[%s2 + $0x80] sm:$0xff] %v351
  %505 = vst.msk [vmem:[%s2 + $0x88] sm:$0xff] %vm488, %v353
  %506 = vst [vmem:[%s2 + $0x90] sm:$0xff] %v357
  %507 = vst.msk [vmem:[%s2 + $0x98] sm:$0xff] %vm488, %v359
  %508 = vst [vmem:[%s2 + $0xa0] sm:$0xff] %v363
  %509 = vst.msk [vmem:[%s2 + $0xa8] sm:$0xff] %vm488, %v365
  %510 = vst [vmem:[%s2 + $0xb0] sm:$0xff] %v369
  %511 = vst.msk [vmem:[%s2 + $0xb8] sm:$0xff] %vm488, %v371
  %512 = vst [vmem:[%s2 + $0xc0] sm:$0xff] %v375
  %513 = vst.msk [vmem:[%s2 + $0xc8] sm:$0xff] %vm488, %v377
  %514 = vst [vmem:[%s2 + $0xd0] sm:$0xff] %v381
  %515 = vst.msk [vmem:[%s2 + $0xd8] sm:$0xff] %vm488, %v383
  %516 = vst [vmem:[%s2 + $0xe0] sm:$0xff] %v387
  %517 = vst.msk [vmem:[%s2 + $0xe8] sm:$0xff] %vm488, %v389
  %518 = vst [vmem:[%s2 + $0xf0] sm:$0xff] %v393
  %519 = vst.msk [vmem:[%s2 + $0xf8] sm:$0xff] %vm488, %v395
  %520 = vst [vmem:[%s2 + $0x100] sm:$0xff] %v399
  %521 = vst.msk [vmem:[%s2 + $0x108] sm:$0xff] %vm488, %v401
  %522 = vst [vmem:[%s2 + $0x110] sm:$0xff] %v405
  %523 = vst.msk [vmem:[%s2 + $0x118] sm:$0xff] %vm488, %v407
  %524 = vst [vmem:[%s2 + $0x120] sm:$0xff] %v411
  %525 = vst.msk [vmem:[%s2 + $0x128] sm:$0xff] %vm488, %v413
  %526 = vst [vmem:[%s2 + $0x130] sm:$0xff] %v417
  %527 = vst.msk [vmem:[%s2 + $0x138] sm:$0xff] %vm488, %v419
  %528 = vst [vmem:[%s2 + $0x140] sm:$0xff] %v423
  %529 = vst.msk [vmem:[%s2 + $0x148] sm:$0xff] %vm488, %v425
  %530 = vst [vmem:[%s2 + $0x150] sm:$0xff] %v429
  %531 = vst.msk [vmem:[%s2 + $0x158] sm:$0xff] %vm488, %v431
  %532 = vst [vmem:[%s2 + $0x160] sm:$0xff] %v435
  %533 = vst.msk [vmem:[%s2 + $0x168] sm:$0xff] %vm488, %v437
  %534 = vst [vmem:[%s2 + $0x170] sm:$0xff] %v441
  %535 = vst.msk [vmem:[%s2 + $0x178] sm:$0xff] %vm488, %v443
  %536 = vst [vmem:[%s2 + $0x180] sm:$0xff] %v447
  %537 = vst.msk [vmem:[%s2 + $0x188] sm:$0xff] %vm488, %v449
  %538 = vst [vmem:[%s2 + $0x190] sm:$0xff] %v453
  %539 = vst.msk [vmem:[%s2 + $0x198] sm:$0xff] %vm488, %v455
  %540 = vst [vmem:[%s2 + $0x1a0] sm:$0xff] %v459
  %541 = vst.msk [vmem:[%s2 + $0x1a8] sm:$0xff] %vm488, %v461
  %542 = vst [vmem:[%s2 + $0x1b0] sm:$0xff] %v465
  %543 = vst.msk [vmem:[%s2 + $0x1b8] sm:$0xff] %vm488, %v467
  %544 = vst [vmem:[%s2 + $0x1c0] sm:$0xff] %v471
  %545 = vst.msk [vmem:[%s2 + $0x1c8] sm:$0xff] %vm488, %v473
  %546 = vst [vmem:[%s2 + $0x1d0] sm:$0xff] %v477
  %547 = vst.msk [vmem:[%s2 + $0x1d8] sm:$0xff] %vm488, %v479
  %548 = vst [vmem:[%s2 + $0x1e0] sm:$0xf] %v483
  %vm549 = vcmask 551936
  %550 = vst.msk [vmem:[%s2 + $0x1e8] sm:$0xf] %vm549, %v485
  // Predicated region
  $region10: #{tpu_custom_call.1} parent=0 // pred_check
    _
  $region11: #{tpu_custom_call.1} parent=0 // pred_check_branch
    %552 = sbr.rel (0) target = $region13
  $region12: #{tpu_custom_call.1} parent=0 // pred_region
    _
  $region13: #{tpu_custom_call.1} parent=0 // pred_fallthru
    _
  // Predicated region
  $region14: #{tpu_custom_call.1} parent=0 // pred_check
    _
  $region15: #{tpu_custom_call.1} parent=0 // pred_check_branch
    %554 = sbr.rel (0) target = $region17
  $region16: #{tpu_custom_call.1} parent=0 // pred_region
    _
  $region17: #{tpu_custom_call.1} parent=0 // pred_fallthru
    _

</llo_original>
